<compile_context>
chip_gen: v6e
topology: v6e:2x2x1
jax: 0.10.0
libtpu: 0.0.40
codegen_flags: <defaults>
</compile_context>

<pallas_src>
import functools

import jax
import jax.numpy as jnp
from jax.experimental import pallas as pl
from jax.experimental.pallas import tpu as pltpu


def _round_up(x, m):
    return (x + m - 1) // m * m


# ---------------------------------------------------------------------------
# Kernels
# ---------------------------------------------------------------------------

def _matmul_bias_kernel(x_ref, w_ref, b_ref, o_ref):
    # Gridless tiny path: whole problem resident.  x:(N,F) w:(F,H) b:(1,H) o:(N,H)
    acc = jnp.dot(x_ref[...], w_ref[...], preferred_element_type=jnp.float32)
    o_ref[...] = (acc + b_ref[...].astype(jnp.float32)).astype(o_ref.dtype)


def _matmul_bias_outacc_kernel(x_ref, w_ref, b_ref, o_ref):
    # Gridded, f32 output: accumulate directly into the k-resident output block.
    k = pl.program_id(2)

    @pl.when(k == 0)
    def _init():
        o_ref[...] = jnp.zeros_like(o_ref) + b_ref[...].astype(o_ref.dtype)

    o_ref[...] += jnp.dot(x_ref[...], w_ref[...],
                          preferred_element_type=jnp.float32)


def _matmul_bias_scratch_kernel(x_ref, w_ref, b_ref, o_ref, acc_ref):
    # Gridded, non-f32 output: f32 scratch accumulator, cast on the last k step.
    k = pl.program_id(2)

    @pl.when(k == 0)
    def _init():
        acc_ref[...] = jnp.zeros_like(acc_ref)

    acc_ref[...] += jnp.dot(x_ref[...], w_ref[...],
                            preferred_element_type=jnp.float32)

    @pl.when(k == pl.num_programs(2) - 1)
    def _finalize():
        o_ref[...] = (acc_ref[...] + b_ref[...].astype(jnp.float32)
                      ).astype(o_ref.dtype)


# ---------------------------------------------------------------------------
# Generation-aware sizing
# ---------------------------------------------------------------------------

@functools.lru_cache(maxsize=1)
def _hw_vmem_params():
    """(tile-search budget, scoped-vmem cap) from the chip's VMEM capacity."""
    vmem_bytes = 64 << 20  # conservative default (v7x-sized) if the query fails
    try:
        info = pltpu.get_tpu_info()
        v = int(getattr(info, "vmem_capacity_bytes", 0) or 0)
        if v > 0:
            vmem_bytes = v
    except Exception:
        pass
    budget = max(min(vmem_bytes // 2, 96 << 20), 16 << 20)
    limit_cap = max(min(int(vmem_bytes * 0.70), 100 << 20), budget + (4 << 20))
    return budget, limit_cap


# ---------------------------------------------------------------------------
# Parameter prep (one-time, outside the per-call hot path)
# ---------------------------------------------------------------------------

_FULL_K_MAX = 2048  # ragged F up to this uses a full-K block; beyond it we pad K


def prepare_linear_params(weight, bias):
    """Pre-transpose W (H,F)->(F,H); pad F to 128 only when K-tiling needs it."""
    H, F = weight.shape
    w_t = weight.T  # (F, H): kernel does a plain [M,K]x[K,N] dot, no XLU transpose
    if F % 128 != 0 and F > _FULL_K_MAX:
        w_t = jnp.pad(w_t, ((0, _round_up(F, 128) - F), (0, 0)))
    b2 = jnp.reshape(bias, (1, H))
    return w_t, b2


# ---------------------------------------------------------------------------
# Linear layer
# ---------------------------------------------------------------------------

def _linear_pallas(x2d, w_t, b2):
    """y = x2d @ w_t + b2.   x2d: (N, F), w_t: (Fp, H) pre-transposed, b2: (1, H)."""
    N, F = x2d.shape
    Fp, H = w_t.shape
    if Fp != F:  # weight was K-padded at prep time; pad activations to match
        x2d = jnp.pad(x2d, ((0, 0), (0, Fp - F)))

    out_dtype = x2d.dtype
    x_item = jnp.dtype(x2d.dtype).itemsize
    w_item = jnp.dtype(w_t.dtype).itemsize
    o_item = jnp.dtype(out_dtype).itemsize
    use_out_acc = jnp.dtype(out_dtype) == jnp.dtype(jnp.float32)

    budget, limit_cap = _hw_vmem_params()
    big_vmem = budget >= (48 << 20)  # 128 MiB parts (v5e/v6e) vs 64 MiB (v7x)

    # Minimum sublane multiple for the row (second-to-last) block dim, by dtype.
    sub = {4: 8, 2: 16, 1: 32}.get(x_item, 8)

    # --- K (reduction) tile ---------------------------------------------------
    k_cap = 2048 if big_vmem else 1024
    if Fp % 128 != 0 or Fp <= k_cap:
        tile_k = Fp                          # full-K block (always layout-legal)
    else:
        tile_k = 128
        for t in (2048, 1024, 512, 256, 128):
            if t <= k_cap and Fp % t == 0:
                tile_k = t
                break

    # --- H (output lane) tile ---------------------------------------------------
    h_cap = 2048 if big_vmem else 1024
    if H <= h_cap:
        tile_h = H                           # full-H block
    elif H % 128 == 0:
        tile_h = 128
        # 256-multiples listed first: v6e/v7x MXU is 256 wide.
        for t in (2048, 1792, 1536, 1280, 1024, 768, 640, 512, 384, 256, 128):
            if t <= h_cap and H % t == 0:
                tile_h = t
                break
    else:
        tile_h = min(h_cap, 512)             # ragged last h-block -> masked stores

    # --- Row tile: largest candidate whose double-buffered footprint fits ------
    def vmem_est(tr):
        v = (2 * tr * tile_k * x_item          # x blocks (double-buffered)
             + 2 * tile_h * tile_k * w_item    # weight blocks
             + 2 * tile_h * 4                  # bias blocks
             + 2 * tr * tile_h * o_item)       # output blocks
        if not use_out_acc:
            v += tr * tile_h * 4               # f32 accumulator scratch
        return v

    row_cap = _round_up(N, sub)
    tile_rows = sub
    for c in (2048, 1536, 1024, 768, 512, 384, 256, 128, 64, 32, 16, 8):
        if c % sub:
            continue
        c = min(c, row_cap)
        if vmem_est(c) <= budget:
            tile_rows = c
            break
    if tile_rows >= N:
        tile_rows = N  # single row block: block == full dim is always legal

    n_i = pl.cdiv(N, tile_rows)
    n_j = pl.cdiv(H, tile_h)
    n_k = pl.cdiv(Fp, tile_k)

    # v7x has 2 TensorCores sharded over 'parallel' grid axes: guarantee at
    # least 2 blocks on a parallel axis whenever there is real (K-tiled) work.
    if n_i == 1 and n_j == 1 and n_k > 1 and N >= 2 * sub:
        tile_rows = _round_up(pl.cdiv(N, 2), sub)
        n_i = pl.cdiv(N, tile_rows)

    grid = (n_i, n_j, n_k)

    est = vmem_est(tile_rows)
    vmem_limit = int(min(max(est * 1.5 + (2 << 20), 24 << 20), limit_cap))

    # Honest bytes_accessed: x is re-read once per h-tile, W once per row-tile.
    cost = pl.CostEstimate(
        flops=int(2 * N * Fp * H),
        transcendentals=0,
        bytes_accessed=int(N * Fp * x_item * n_j
                           + Fp * H * w_item * n_i
                           + H * 4 * n_i * n_j
                           + N * H * o_item),
    )

    if grid == (1, 1, 1):
        # Tiny problem: one gridless block fully resident in VMEM.
        return pl.pallas_call(
            _matmul_bias_kernel,
            out_shape=jax.ShapeDtypeStruct((N, H), out_dtype),
            in_specs=[pl.BlockSpec(memory_space=pltpu.MemorySpace.VMEM)] * 3,
            out_specs=pl.BlockSpec(memory_space=pltpu.MemorySpace.VMEM),
            compiler_params=pltpu.CompilerParams(vmem_limit_bytes=vmem_limit),
            cost_estimate=cost,
        )(x2d, w_t, b2)

    if use_out_acc:
        kernel = _matmul_bias_outacc_kernel
        scratch = []
    else:
        kernel = _matmul_bias_scratch_kernel
        scratch = [pltpu.VMEM((tile_rows, tile_h), jnp.float32)]

    return pl.pallas_call(
        kernel,
        out_shape=jax.ShapeDtypeStruct((N, H), out_dtype),
        grid_spec=pltpu.PrefetchScalarGridSpec(
            num_scalar_prefetch=0,
            grid=grid,
            in_specs=[
                pl.BlockSpec((tile_rows, tile_k), lambda i, j, k: (i, k)),
                pl.BlockSpec((tile_k, tile_h), lambda i, j, k: (k, j)),
                pl.BlockSpec((1, tile_h), lambda i, j, k: (0, j)),
            ],
            out_specs=pl.BlockSpec((tile_rows, tile_h), lambda i, j, k: (i, j)),
            scratch_shapes=scratch,
        ),
        compiler_params=pltpu.CompilerParams(
            dimension_semantics=("parallel", "parallel", "arbitrary"),
            vmem_limit_bytes=vmem_limit,
        ),
        cost_estimate=cost,
    )(x2d, w_t, b2)


# ---------------------------------------------------------------------------
# TimeDistributed wrappers
# ---------------------------------------------------------------------------

def _time_distributed_prepped(x, w_t, b2, *, batch_first=False):
    if x.ndim == 1:
        return _linear_pallas(x[None, :], w_t, b2)[0]
    if x.ndim == 2:
        return _linear_pallas(x, w_t, b2)
    F = x.shape[-1]
    y = _linear_pallas(x.reshape(-1, F), w_t, b2)    # contiguous().view(-1, F)
    H = y.shape[-1]
    if batch_first:
        return y.reshape(x.shape[0], -1, H)          # y.view(x.size(0), -1, H)
    return y.reshape(-1, x.shape[1], H)              # y.view(-1, x.size(1), H)


def make_time_distributed_linear(weight, bias, *, batch_first=False):
    """Factory: prep params ONCE (pad/transpose hoisted out of the hot path)."""
    w_t, b2 = prepare_linear_params(weight, bias)

    @jax.jit
    def fwd(x):
        return _time_distributed_prepped(x, w_t, b2, batch_first=batch_first)

    return fwd


def time_distributed_linear(x, weight, bias, *, batch_first=False):
    """Direct JAX/Pallas equivalent of TimeDistributed(nn.Linear(F, H))."""
    w_t, b2 = prepare_linear_params(weight, bias)
    return _time_distributed_prepped(x, w_t, b2, batch_first=batch_first)


# ---------------------------------------------------------------------------

if __name__ == "__main__":
    key = jax.random.PRNGKey(0)
    k_x, k_w, k_b = jax.random.split(key, 3)

    # 1) Small shapes matching the module's intended use: x (T=8, B=2, F=32), H=32.
    T, B, F, H = 8, 2, 32, 32
    x = jax.random.normal(k_x, (T, B, F), dtype=jnp.float32)
    weight = jax.random.normal(k_w, (H, F), dtype=jnp.float32) * 0.1
    bias = jax.random.normal(k_b, (H,), dtype=jnp.float32) * 0.1

    fwd = make_time_distributed_linear(weight, bias, batch_first=False)
    y = fwd(x)
    jax.block_until_ready(y)

    y_ref = (jnp.dot(x.reshape(-1, F), weight.T,
                     precision=jax.lax.Precision.HIGHEST) + bias
             ).reshape(-1, B, H)
    assert y.shape == (T, B, H), y.shape
    assert jnp.allclose(y, y_ref, atol=5e-3, rtol=5e-3)

    # 2) Larger layer: exercises the gridded, K-tiled, output-accumulator path.
    T2, B2, F2, H2 = 32, 4, 4096, 256
    x2 = jax.random.normal(k_x, (T2, B2, F2), dtype=jnp.float32) * 0.05
    w2 = jax.random.normal(k_w, (H2, F2), dtype=jnp.float32) * 0.05
    bias2 = jax.random.normal(k_b, (H2,), dtype=jnp.float32) * 0.05
    y2 = jax.jit(time_distributed_linear)(x2, w2, bias2)
    jax.block_until_ready(y2)

    y2_ref = (jnp.dot(x2.reshape(-1, F2), w2.T,
                      precision=jax.lax.Precision.HIGHEST) + bias2
              ).reshape(-1, B2, H2)
    assert y2.shape == (T2, B2, H2), y2.shape
    assert jnp.allclose(y2, y2_ref, atol=3e-3, rtol=3e-3)

    # 3) bf16 activations/weights: exercises the f32-scratch accumulator path.
    T3, B3, F3, H3 = 4, 8, 4096, 128
    x3 = (jax.random.normal(k_x, (T3, B3, F3), dtype=jnp.float32) * 0.05
          ).astype(jnp.bfloat16)
    w3 = (jax.random.normal(k_w, (H3, F3), dtype=jnp.float32) * 0.05
          ).astype(jnp.bfloat16)
    bias3 = jax.random.normal(k_b, (H3,), dtype=jnp.float32) * 0.05
    y3 = jax.jit(time_distributed_linear)(x3, w3, bias3)
    jax.block_until_ready(y3)

    y3_ref = (jnp.dot(x3.reshape(-1, F3).astype(jnp.float32),
                      w3.T.astype(jnp.float32),
                      precision=jax.lax.Precision.HIGHEST) + bias3
              ).reshape(-1, B3, H3)
    assert y3.shape == (T3, B3, H3), y3.shape
    assert jnp.allclose(y3.astype(jnp.float32), y3_ref, atol=2e-2, rtol=2e-2)

    print("KERNEL_OK")
</pallas_src>

<mosaic_0001>
module attributes {stable_mosaic.version = 11 : i64} {
  func.func @_matmul_bias_kernel(%arg0: memref<16x32xf32, #tpu.memory_space<vmem>>, %arg1: memref<32x32xf32, #tpu.memory_space<vmem>>, %arg2: memref<1x32xf32, #tpu.memory_space<vmem>>, %arg3: memref<16x32xf32, #tpu.memory_space<vmem>>) attributes {dimension_semantics = [], scalar_prefetch = 0 : i64, scratch_operands = 0 : i64, tpu.core_type = #tpu.core_type<tc>} {
    %c0 = arith.constant 0 : index
    %c0_0 = arith.constant 0 : index
    %0 = vector.load %arg0[%c0, %c0_0] : memref<16x32xf32, #tpu.memory_space<vmem>>, vector<16x32xf32>
    %c0_1 = arith.constant 0 : index
    %c0_2 = arith.constant 0 : index
    %1 = vector.load %arg1[%c0_1, %c0_2] : memref<32x32xf32, #tpu.memory_space<vmem>>, vector<32x32xf32>
    %cst = arith.constant dense<0.000000e+00> : vector<16x32xf32>
    %2 = tpu.matmul %0, %1, %cst {dimension_numbers = #tpu.dot_dimension_numbers<[1], [0], [0], [1], [0, 0, 1, 1], [], []>} : vector<16x32xf32>, vector<32x32xf32>, vector<16x32xf32> -> vector<16x32xf32>
    %c0_3 = arith.constant 0 : index
    %c0_4 = arith.constant 0 : index
    %3 = vector.load %arg2[%c0_3, %c0_4] : memref<1x32xf32, #tpu.memory_space<vmem>>, vector<1x32xf32>
    %4 = vector.broadcast %3 : vector<1x32xf32> to vector<16x32xf32>
    %5 = arith.addf %2, %4 : vector<16x32xf32>
    %c0_5 = arith.constant 0 : index
    %c0_6 = arith.constant 0 : index
    %6 = vector.load %arg3[%c0_5, %c0_6] : memref<16x32xf32, #tpu.memory_space<vmem>>, vector<16x32xf32>
    tpu.vector_store %arg3[%c0_5, %c0_6], %5 {strides = array<i32>} : memref<16x32xf32, #tpu.memory_space<vmem>>, vector<16x32xf32>,
    return
  }
}

</mosaic_0001>

<llo_original>
// kernel: fwd.1
$region0: #{fwd.1}
  #allocation0 [shape = 'u32[]', space=smem, size = 0x4, offset = 0x4, fixed_abs, tag = 'smem constant byte address 0x4 - core index']
  #allocation1 [shape = 'u32[144,128]{1,0:T(1,128)}', space=vmem, size = 0x12000, scoped, tag = 'internal scratch']
  %s0 = inlined_call_operand.hbm [shape: f32[16,32], index: 0, kind: input, shape index: {}]
  %s1 = inlined_call_operand.hbm [shape: f32[32,32], index: 1, kind: input, shape index: {}]
  %s2 = inlined_call_operand.vmem [shape: f32[1,32], index: 2, kind: input, shape index: {}]
  %s3 = inlined_call_operand.hbm [shape: f32[16,32], index: 3, kind: output, shape index: {}]
  %s4 = sld [smem:[#allocation0]]
  $region30: #{fwd.1} parent=0
    _
  %s6 = ssub.s32 1, %s4
  %s7 = scalar_select 0, %s6, %s4
  $region1: #{fwd.1} parent=0
    #allocation2 [shape = 'u8[8192]{0}', space=vmem, size = 0x2000, scoped, tag = 'input window, operand 0, single buffered']
    #allocation3 [shape = 's32[1]{0}', space=sflag, size = 0x4, scoped, tag = 'scoped memory for fwd.1']
    #allocation4 [shape = 's32[1]{0}', space=sflag, size = 0x4, scoped, tag = 'scoped memory for fwd.1']
    #allocation5 [shape = 'u8[16384]{0}', space=vmem, size = 0x4000, scoped, tag = 'input window, operand 1, single buffered']
    #allocation6 [shape = 's32[1]{0}', space=sflag, size = 0x4, scoped, tag = 'scoped memory for fwd.1']
    #allocation7 [shape = 'u8[8192]{0}', space=vmem, size = 0x2000, scoped, tag = 'output window, operand 0, single buffered']
    %8 = vsyncpa [#allocation3], 0
    %9 = vsyncpa [#allocation6], 0
    %10 = vsyncpa [#allocation4], 0
    // Predicated region
    $region2: #{fwd.1} parent=1 // pred_check
      _
    $region3: #{fwd.1} parent=1 // pred_check_branch
      %12 = sbr.rel (0) target = $region5
    $region4: #{fwd.1} parent=1 // pred_region
      %s14 = ssub.s32 256, 256
      %15 = vsyncadd [#allocation3], %s14
      %s16 = sshll.u32 [#allocation2], 4
      %s17 = int_to_ptr.vmem [resolvable:$true] %s16
      %22 = dma.hbm_to_vmem [thread:$0]  %s0, 256, %s17, [#allocation3], 128, 128, 8
    $region5: #{fwd.1} parent=1 // pred_fallthru
      _
    // Predicated region
    $region6: #{fwd.1} parent=1 // pred_check
      _
    $region7: #{fwd.1} parent=1 // pred_check_branch
      %24 = sbr.rel (0) target = $region9
    $region8: #{fwd.1} parent=1 // pred_region
      %s26 = ssub.s32 512, 512
      %27 = vsyncadd [#allocation6], %s26
      %s28 = sshll.u32 [#allocation5], 4
      %s29 = int_to_ptr.vmem [resolvable:$true] %s28
      %34 = dma.hbm_to_vmem [thread:$0]  %s1, 512, %s29, [#allocation6], 128, 128, 8
    $region9: #{fwd.1} parent=1 // pred_fallthru
      _
    // Predicated region
    $region10: #{fwd.1} parent=1 // pred_check
      _
    $region11: #{fwd.1} parent=1 // pred_check_branch
      %36 = sbr.rel (0) target = $region13
    $region12: #{fwd.1} parent=1 // pred_region
      _
    $region13: #{fwd.1} parent=1 // pred_fallthru
      _
    // Predicated region
    $region14: #{fwd.1} parent=1 // pred_check
      _
    $region15: #{fwd.1} parent=1 // pred_check_branch
      %38 = sbr.rel (0) target = $region17
    $region16: #{fwd.1} parent=1 // pred_region
      %39 = dma.done [#allocation3], 256
    $region17: #{fwd.1} parent=1 // pred_fallthru
      _
    // Predicated region
    $region18: #{fwd.1} parent=1 // pred_check
      _
    $region19: #{fwd.1} parent=1 // pred_check_branch
      %41 = sbr.rel (0) target = $region21
    $region20: #{fwd.1} parent=1 // pred_region
      %42 = dma.done [#allocation6], 512
    $region21: #{fwd.1} parent=1 // pred_fallthru
      _
    %v43 = vld [vmem:[#allocation2] sm:$0xff]
    %v44 = vld [vmem:[#allocation2 + $0x8] sm:$0xff]
    %v45 = vld [vmem:[#allocation5] sm:$0xff]
    %v46 = vld [vmem:[#allocation5 + $0x8] sm:$0xff]
    %v47 = vld [vmem:[#allocation5 + $0x10] sm:$0xff]
    %v48 = vld [vmem:[#allocation5 + $0x18] sm:$0xff]
    %v49 = vld [vmem:[%s2] sm:$0x1]
    %v51 = vlaneseq
    %v52 = vshrl.u32 %v51, 7
    %v53 = vsub.s32 0, %v52
    %v54 = vrot.slane %v49, %v53
    %vm56 = vcmask 261120
    %v58 = vsel %vm56, %v43, 0
    %v61 = vsel %vm56, %v44, 0
    %63 = vmatprep.subr.mxu0 0.0
    %64 = vmatpush1.msra.mxu0 0.0
    %65 = vmatprep.subr.mxu0 0.0
    %66 = vmatpush1.msra.mxu0 0.0
    %67 = vmatprep.subr.mxu0 0.0
    %68 = vmatpush1.msra.mxu0 0.0
    %69 = vmatprep.subr.mxu0 0.0
    %70 = vmatpush1.msra.mxu0 0.0
    %71 = vmatprep.subr.mxu0 0.0
    %72 = vmatpush1.msra.mxu0 0.0
    %73 = vmatprep.subr.mxu0 0.0
    %74 = vmatpush1.msra.mxu0 0.0
    %75 = vmatprep.subr.mxu0 0.0
    %76 = vmatpush1.msra.mxu0 0.0
    %77 = vmatprep.subr.mxu0 0.0
    %78 = vmatpush1.msra.mxu0 0.0
    %79 = vmatprep.subr.mxu0 0.0
    %80 = vmatpush1.msra.mxu0 0.0
    %81 = vmatprep.subr.mxu0 0.0
    %82 = vmatpush1.msra.mxu0 0.0
    %83 = vmatprep.subr.mxu0 0.0
    %84 = vmatpush1.msra.mxu0 0.0
    %85 = vmatprep.subr.mxu0 0.0
    %86 = vmatpush1.msra.mxu0 0.0
    %87 = vmatprep.subr.mxu0 0.0
    %88 = vmatpush1.msra.mxu0 %v48
    %89 = vmatprep.subr.mxu0 0.0
    %90 = vmatpush1.msra.mxu0 %v47
    %91 = vmatprep.subr.mxu0 0.0
    %92 = vmatpush1.msra.mxu0 %v46
    %93 = vmatprep.subr.mxu0 0.0
    %94 = vmatpush1.msra.mxu0 %v45
    %95 = vmatprep.subr.mxu0 0.0
    %96 = vmatpush2.msra.mxu0 0.0
    %97 = vmatprep.subr.mxu0 0.0
    %98 = vmatpush2.msra.mxu0 0.0
    %99 = vmatprep.subr.mxu0 0.0
    %100 = vmatpush2.msra.mxu0 0.0
    %101 = vmatprep.subr.mxu0 0.0
    %102 = vmatpush2.msra.mxu0 0.0
    %103 = vmatprep.subr.mxu0 0.0
    %104 = vmatpush2.msra.mxu0 0.0
    %105 = vmatprep.subr.mxu0 0.0
    %106 = vmatpush2.msra.mxu0 0.0
    %107 = vmatprep.subr.mxu0 0.0
    %108 = vmatpush2.msra.mxu0 0.0
    %109 = vmatprep.subr.mxu0 0.0
    %110 = vmatpush2.msra.mxu0 0.0
    %111 = vmatprep.subr.mxu0 0.0
    %112 = vmatpush2.msra.mxu0 0.0
    %113 = vmatprep.subr.mxu0 0.0
    %114 = vmatpush2.msra.mxu0 0.0
    %115 = vmatprep.subr.mxu0 0.0
    %116 = vmatpush2.msra.mxu0 0.0
    %117 = vmatprep.subr.mxu0 0.0
    %118 = vmatpush2.msra.mxu0 0.0
    %119 = vmatprep.subr.mxu0 0.0
    %120 = vmatpush2.msra.mxu0 0.0
    %121 = vmatprep.subr.mxu0 0.0
    %122 = vmatpush2.msra.mxu0 0.0
    %123 = vmatprep.subr.mxu0 0.0
    %124 = vmatpush2.msra.mxu0 0.0
    %125 = vmatprep.subr.mxu0 0.0
    %126 = vmatpush2.msra.mxu0 0.0
    %127 = vmatprep.mubr.f32.mxu0 0.0
    %128 = vmatmul.mubr.f32.gmra.mxu0 %v58
    %v129 = vpop.f32.mrf.mxu0
    %v130 = vadd.f32 %v54, %v129
    %v131 = vpop.f32.mrf.mxu0
    %132 = vmatprep.mubr.f32.mxu0 0.0
    %133 = vmatmul.mubr.f32.gmra.mxu0 %v61
    %v134 = vpop.f32.mrf.mxu0
    %v135 = vadd.f32 %v54, %v134
    %v136 = vpop.f32.mrf.mxu0
    %137 = vdwg.mxu0
    %138 = vst.msk [vmem:[#allocation7] sm:$0xff] %vm56, %v130
    %139 = vst.msk [vmem:[#allocation7 + $0x8] sm:$0xff] %vm56, %v135
    // Predicated region
    $region22: #{fwd.1} parent=1 // pred_check
      _
    $region23: #{fwd.1} parent=1 // pred_check_branch
      %141 = sbr.rel (0) target = $region25
    $region24: #{fwd.1} parent=1 // pred_region
      %s143 = ssub.s32 256, 256
      %144 = vsyncadd [#allocation4], %s143
      %s145 = sshll.u32 [#allocation7], 4
      %s146 = int_to_ptr.vmem [resolvable:$true] %s145
      %151 = dma.vmem_to_hbm [thread:$0]  %s146, 256, %s3, [#allocation4], 128, 128, 8
    $region25: #{fwd.1} parent=1 // pred_fallthru
      _
    // Predicated region
    $region26: #{fwd.1} parent=1 // pred_check
      _
    $region27: #{fwd.1} parent=1 // pred_check_branch
      %153 = sbr.rel (0) target = $region29
    $region28: #{fwd.1} parent=1 // pred_region
      %154 = dma.done [#allocation4], 256
    $region29: #{fwd.1} parent=1 // pred_fallthru
      _
    %155 = vsyncpa [#allocation3], 1
    %156 = vsyncpa [#allocation6], 1
    %157 = vsyncpa [#allocation4], 1

</llo_original>
